<compile_context>
chip_gen: v7x
topology: tpu7x:2x2x1
jax: 0.10.0
libtpu: 0.0.40
codegen_flags: <defaults>
</compile_context>

<pallas_src>
import functools

import jax
import jax.numpy as jnp
import numpy as np
from jax.experimental import pallas as pl
from jax.experimental.pallas import tpu as pltpu


def _get_loss_kernel(pred_ref, target_ref, trans_ref, out_ref, *,
                     true_b, tb, k, inv_b, reg_scale):
    # pred_ref:   (TB, C)  f32 log-probabilities
    # target_ref: (TB, 1)  int32 class ids (padded rows hold -1)
    # trans_ref:  (TB, K, K) f32/bf16 feature-transform matrices
    # out_ref:    (1, 8, 128) f32 partial-sum tile for this batch block
    TB, C = pred_ref.shape

    # ---------------- NLL partial: -sum_i pred[i, target[i]] ----------------
    # Padded rows carry target = -1, so no class matches and they add 0.
    pred = pred_ref[...]                                    # (TB, C) f32
    tgt = target_ref[...]                                   # (TB, 1) int32
    class_ids = jax.lax.broadcasted_iota(jnp.int32, (TB, C), 1)
    nll_part = -jnp.sum(jnp.where(class_ids == tgt, pred, jnp.float32(0.0)))

    # -------- feature-transform regularizer partial (batched MXU) --------
    t = trans_ref[...]                                      # (TB, K, K)
    gram = jnp.einsum("bij,bkj->bik", t, t,
                      preferred_element_type=jnp.float32)   # (TB, K, K) f32

    # ||G - I||_F^2 = sum(G*G) - 2*trace(G) + K   (no eye/diff materialization)
    row = jax.lax.broadcasted_iota(jnp.int32, (k, k), 0)
    col = jax.lax.broadcasted_iota(jnp.int32, (k, k), 1)
    diag = (row == col).astype(jnp.float32)                 # (K, K)

    gg = jnp.sum(jnp.sum(gram * gram, axis=2), axis=1, keepdims=True)   # (TB,1)
    tr = jnp.sum(jnp.sum(gram * diag[None], axis=2), axis=1, keepdims=True)
    frob_sq = gg - 2.0 * tr + jnp.float32(k)                # (TB, 1)
    frob = jnp.sqrt(jnp.maximum(frob_sq, jnp.float32(0.0))) # one EUP pass

    # Mask padded batch rows (global index >= true B).
    gidx = (pl.program_id(0) * tb
            + jax.lax.broadcasted_iota(jnp.int32, (TB, 1), 0))
    valid = (gidx < true_b).astype(jnp.float32)             # (TB, 1)
    frob_part = jnp.sum(frob * valid)

    # Partial of the final scalar for this block (divides folded into consts).
    partial = nll_part * jnp.float32(inv_b) + frob_part * jnp.float32(reg_scale)

    # Lane-dense unmasked store of the partial sum.
    out_ref[...] = jnp.full(out_ref.shape, partial, dtype=jnp.float32)


def get_loss(pred, target, trans_feat, mat_diff_loss_scale=0.001,
             matmul_dtype=jnp.bfloat16):
    """pred: (B, C) f32 log-probs, target: (B,) ints, trans_feat: (B, K, K)."""
    B, C = pred.shape
    K = int(trans_feat.shape[1])

    pred = pred.astype(jnp.float32)
    target2d = target.astype(jnp.int32).reshape(B, 1)
    trans = trans_feat.astype(matmul_dtype)

    itemsize = jnp.dtype(matmul_dtype).itemsize

    # Batch tile: keep the trans block at ~<=1 MiB; TB must be a multiple of 8
    # (sublane rule for the (TB, C)/(TB, 1) blocks) unless TB == B.
    tb_cap = max(8, (((1 << 20) // max(1, K * K * itemsize)) // 8) * 8)
    if B <= tb_cap:
        TB, Bp = B, B
    else:
        TB = tb_cap
        Bp = ((B + TB - 1) // TB) * TB
        if Bp != B:
            pred = jnp.pad(pred, ((0, Bp - B), (0, 0)))
            target2d = jnp.pad(target2d, ((0, Bp - B), (0, 0)),
                               constant_values=-1)
            trans = jnp.pad(trans, ((0, Bp - B), (0, 0), (0, 0)))
    G = Bp // TB

    cost = pl.CostEstimate(
        flops=2 * B * K * K * K + 4 * B * C,
        transcendentals=B,
        bytes_accessed=4 * B * C + 4 * B + itemsize * B * K * K + 4 * G * 8 * 128,
    )

    kernel = functools.partial(
        _get_loss_kernel,
        true_b=int(B),
        tb=int(TB),
        k=K,
        inv_b=1.0 / float(B),
        reg_scale=float(mat_diff_loss_scale) / float(B),
    )

    out = pl.pallas_call(
        kernel,
        out_shape=jax.ShapeDtypeStruct((G, 8, 128), jnp.float32),
        grid_spec=pltpu.PrefetchScalarGridSpec(
            num_scalar_prefetch=0,
            grid=(G,),
            in_specs=[
                pl.BlockSpec((TB, C), lambda i: (i, 0)),        # pred
                pl.BlockSpec((TB, 1), lambda i: (i, 0)),        # target
                pl.BlockSpec((TB, K, K), lambda i: (i, 0, 0)),  # trans_feat
            ],
            out_specs=pl.BlockSpec((1, 8, 128), lambda i: (i, 0, 0)),
        ),
        compiler_params=pltpu.CompilerParams(
            dimension_semantics=("parallel",)),
        cost_estimate=cost,
    )(pred, target2d, trans)

    # Tiny final reduction over per-block partial sums (outside the kernel so
    # the grid axis can stay "parallel" on v7x's two TensorCores).
    return jnp.sum(out[:, 0, 0])


def _reference(pred, target, trans_feat, scale=0.001):
    B = pred.shape[0]
    nll = -jnp.mean(pred[jnp.arange(B), target])
    K = trans_feat.shape[1]
    gram = jnp.einsum("bij,bkj->bik", trans_feat, trans_feat)
    diff = gram - jnp.eye(K)[None]
    mat = jnp.mean(jnp.sqrt(jnp.sum(diff * diff, axis=(1, 2))))
    return nll + mat * scale


if __name__ == "__main__":
    B, C, K = 2, 16, 32
    key = jax.random.PRNGKey(0)
    k1, k2, k3 = jax.random.split(key, 3)

    logits = jax.random.normal(k1, (B, C), dtype=jnp.float32)
    pred = jax.nn.log_softmax(logits, axis=-1)       # log-probs, like PointNet head
    target = jax.random.randint(k2, (B,), 0, C, dtype=jnp.int32)
    trans_feat = jax.random.normal(k3, (B, K, K), dtype=jnp.float32)

    ref = _reference(pred, target, trans_feat, 0.001)

    # f32 MXU operands: bit-faithful path, tight tolerance.
    out_f32 = get_loss(pred, target, trans_feat, mat_diff_loss_scale=0.001,
                       matmul_dtype=jnp.float32)
    out_f32 = jax.block_until_ready(out_f32)
    if not np.allclose(np.asarray(out_f32), np.asarray(ref), rtol=1e-4, atol=1e-4):
        raise SystemExit(f"f32 mismatch: kernel={out_f32} ref={ref}")

    # Default bf16 MXU operands: regularizer term is scaled by 1e-3, so only a
    # loose tolerance is needed vs. the f32 reference (intentional trade-off).
    out_bf16 = get_loss(pred, target, trans_feat, mat_diff_loss_scale=0.001)
    out_bf16 = jax.block_until_ready(out_bf16)
    if not np.allclose(np.asarray(out_bf16), np.asarray(ref), rtol=5e-3, atol=5e-3):
        raise SystemExit(f"bf16 mismatch: kernel={out_bf16} ref={ref}")

    print("KERNEL_OK")
</pallas_src>

<mosaic_0001>
module attributes {stable_mosaic.version = 11 : i64} {
  func.func @_get_loss_kernel(%arg0: i32, %arg1: memref<2x16xf32, #tpu.memory_space<vmem>>, %arg2: memref<2x1xi32, #tpu.memory_space<vmem>>, %arg3: memref<2x32x32xf32, #tpu.memory_space<vmem>>, %arg4: memref<1x8x128xf32, #tpu.memory_space<vmem>>) attributes {dimension_semantics = [#tpu.dimension_semantics<parallel>], iteration_bounds = array<i64: 1>, scalar_prefetch = 0 : i64, scratch_operands = 0 : i64, tpu.core_type = #tpu.core_type<tc>, window_params = [{transform_indices = @transform_0, window_bounds = array<i64: 2, 16>}, {transform_indices = @transform_1, window_bounds = array<i64: 2, 1>}, {transform_indices = @transform_2, window_bounds = array<i64: 2, 32, 32>}, {transform_indices = @transform_3, window_bounds = array<i64: 1, 8, 128>}]} {
    %c0 = arith.constant 0 : index
    %c0_0 = arith.constant 0 : index
    %0 = vector.load %arg1[%c0, %c0_0] : memref<2x16xf32, #tpu.memory_space<vmem>>, vector<2x16xf32>
    %c0_1 = arith.constant 0 : index
    %c0_2 = arith.constant 0 : index
    %1 = vector.load %arg2[%c0_1, %c0_2] : memref<2x1xi32, #tpu.memory_space<vmem>>, vector<2x1xi32>
    %2 = tpu.iota {dimensions = array<i32: 1>} : vector<2x16xi32>
    %3 = vector.broadcast %1 : vector<2x1xi32> to vector<2x16xi32>
    %4 = arith.cmpi eq, %2, %3 : vector<2x16xi32>
    %cst = arith.constant 0.000000e+00 : f32
    %5 = vector.broadcast %cst : f32 to vector<2x16xf32>
    %6 = arith.select %4, %0, %5 : vector<2x16xi1>, vector<2x16xf32>
    %7 = vector.shape_cast %6 : vector<2x16xf32> to vector<1x2x16xf32>
    %cst_3 = arith.constant dense<0.000000e+00> : vector<1xf32>
    %8 = vector.multi_reduction <add>, %7, %cst_3 [1, 2] : vector<1x2x16xf32> to vector<1xf32>
    %9 = vector.shape_cast %8 : vector<1xf32> to vector<1x1x1xf32>
    %10 = vector.extract %9[0, 0, 0] : f32 from vector<1x1x1xf32>
    %cst_4 = arith.constant 0.000000e+00 : f32
    %11 = arith.subf %cst_4, %10 : f32
    %c0_5 = arith.constant 0 : index
    %c0_6 = arith.constant 0 : index
    %c0_7 = arith.constant 0 : index
    %12 = vector.load %arg3[%c0_5, %c0_6, %c0_7] : memref<2x32x32xf32, #tpu.memory_space<vmem>>, vector<2x32x32xf32>
    "tpu.trace_start"() <{level = 10 : i32, message = "bij,bkj->bik"}> : () -> ()
    %cst_8 = arith.constant dense<0.000000e+00> : vector<2x32x32xf32>
    %13 = tpu.matmul %12, %12, %cst_8 {dimension_numbers = #tpu.dot_dimension_numbers<[2], [2], [1], [1], [0, 0, 0, 1, 1, 1], [0], [0]>} : vector<2x32x32xf32>, vector<2x32x32xf32>, vector<2x32x32xf32> -> vector<2x32x32xf32>
    "tpu.trace_stop"() : () -> ()
    %14 = tpu.iota {dimensions = array<i32: 0>} : vector<32x32xi32>
    %15 = tpu.iota {dimensions = array<i32: 1>} : vector<32x32xi32>
    %16 = arith.cmpi eq, %14, %15 : vector<32x32xi32>
    %17 = arith.extui %16 : vector<32x32xi1> to vector<32x32xi32>
    %18 = arith.sitofp %17 : vector<32x32xi32> to vector<32x32xf32>
    %19 = arith.mulf %13, %13 : vector<2x32x32xf32>
    %cst_9 = arith.constant dense<0.000000e+00> : vector<2x32xf32>
    %20 = vector.multi_reduction <add>, %19, %cst_9 [2] : vector<2x32x32xf32> to vector<2x32xf32>
    %cst_10 = arith.constant dense<0.000000e+00> : vector<2xf32>
    %21 = vector.multi_reduction <add>, %20, %cst_10 [1] : vector<2x32xf32> to vector<2xf32>
    %22 = vector.shape_cast %21 : vector<2xf32> to vector<2x1xf32>
    %23 = vector.shape_cast %18 : vector<32x32xf32> to vector<1x32x32xf32>
    %24 = vector.broadcast %23 : vector<1x32x32xf32> to vector<2x32x32xf32>
    %25 = arith.mulf %13, %24 : vector<2x32x32xf32>
    %cst_11 = arith.constant dense<0.000000e+00> : vector<2x32xf32>
    %26 = vector.multi_reduction <add>, %25, %cst_11 [2] : vector<2x32x32xf32> to vector<2x32xf32>
    %cst_12 = arith.constant dense<0.000000e+00> : vector<2xf32>
    %27 = vector.multi_reduction <add>, %26, %cst_12 [1] : vector<2x32xf32> to vector<2xf32>
    %28 = vector.shape_cast %27 : vector<2xf32> to vector<2x1xf32>
    %cst_13 = arith.constant 2.000000e+00 : f32
    %29 = vector.broadcast %cst_13 : f32 to vector<2x1xf32>
    %30 = arith.mulf %29, %28 : vector<2x1xf32>
    %31 = arith.subf %22, %30 : vector<2x1xf32>
    %cst_14 = arith.constant 3.200000e+01 : f32
    %32 = vector.broadcast %cst_14 : f32 to vector<2x1xf32>
    %33 = arith.addf %31, %32 : vector<2x1xf32>
    %cst_15 = arith.constant 0.000000e+00 : f32
    %34 = vector.broadcast %cst_15 : f32 to vector<2x1xf32>
    %35 = arith.maximumf %33, %34 : vector<2x1xf32>
    %36 = math.sqrt %35 : vector<2x1xf32>
    %c2_i32 = arith.constant 2 : i32
    %37 = arith.muli %arg0, %c2_i32 : i32
    %38 = tpu.iota {dimensions = array<i32: 0>} : vector<2x1xi32>
    %39 = vector.broadcast %37 : i32 to vector<2x1xi32>
    %40 = arith.addi %39, %38 : vector<2x1xi32>
    %c2_i32_16 = arith.constant 2 : i32
    %41 = vector.broadcast %c2_i32_16 : i32 to vector<2x1xi32>
    %42 = arith.cmpi slt, %40, %41 : vector<2x1xi32>
    %43 = arith.extui %42 : vector<2x1xi1> to vector<2x1xi32>
    %44 = arith.sitofp %43 : vector<2x1xi32> to vector<2x1xf32>
    %45 = arith.mulf %36, %44 : vector<2x1xf32>
    %46 = vector.shape_cast %45 : vector<2x1xf32> to vector<1x2x1xf32>
    %cst_17 = arith.constant dense<0.000000e+00> : vector<1xf32>
    %47 = vector.multi_reduction <add>, %46, %cst_17 [1, 2] : vector<1x2x1xf32> to vector<1xf32>
    %48 = vector.shape_cast %47 : vector<1xf32> to vector<1x1x1xf32>
    %49 = vector.extract %48[0, 0, 0] : f32 from vector<1x1x1xf32>
    %cst_18 = arith.constant 5.000000e-01 : f32
    %50 = arith.mulf %11, %cst_18 : f32
    %cst_19 = arith.constant 5.000000e-04 : f32
    %51 = arith.mulf %49, %cst_19 : f32
    %52 = arith.addf %50, %51 : f32
    %53 = vector.broadcast %52 : f32 to vector<1x8x128xf32>
    %c0_20 = arith.constant 0 : index
    %c0_21 = arith.constant 0 : index
    %c0_22 = arith.constant 0 : index
    %54 = vector.load %arg4[%c0_20, %c0_21, %c0_22] : memref<1x8x128xf32, #tpu.memory_space<vmem>>, vector<1x8x128xf32>
    tpu.vector_store %arg4[%c0_20, %c0_21, %c0_22], %53 {strides = array<i32>} : memref<1x8x128xf32, #tpu.memory_space<vmem>>, vector<1x8x128xf32>,
    return
  }
  func.func @transform_0(%arg0: i32) -> (i32, i32) {
    %c0_i32 = arith.constant 0 : i32
    %c0_i32_0 = arith.constant 0 : i32
    return %arg0, %c0_i32 : i32, i32
  }
  func.func @transform_1(%arg0: i32) -> (i32, i32) {
    %c0_i32 = arith.constant 0 : i32
    %c0_i32_0 = arith.constant 0 : i32
    return %arg0, %c0_i32 : i32, i32
  }
  func.func @transform_2(%arg0: i32) -> (i32, i32, i32) {
    %c0_i32 = arith.constant 0 : i32
    %c0_i32_0 = arith.constant 0 : i32
    %c0_i32_1 = arith.constant 0 : i32
    return %arg0, %c0_i32, %c0_i32_0 : i32, i32, i32
  }
  func.func @transform_3(%arg0: i32) -> (i32, i32, i32) {
    %c0_i32 = arith.constant 0 : i32
    %c0_i32_0 = arith.constant 0 : i32
    %c0_i32_1 = arith.constant 0 : i32
    return %arg0, %c0_i32, %c0_i32_0 : i32, i32, i32
  }
}

</mosaic_0001>

<llo_original>
// kernel: tpu_custom_call.1
$region0: #{tpu_custom_call.1}
  #allocation0 [shape = 'u32[]', space=smem, size = 0x4, offset = 0x4, fixed_abs, tag = 'smem constant byte address 0x4 - core index']
  #allocation1 [shape = 'u32[144,128]{1,0:T(1,128)}', space=vmem, size = 0x12000, scoped, tag = 'internal scratch']
  %s0 = inlined_call_operand.vmem [shape: f32[2,16], index: 0, kind: input, shape index: {}]
  %s1 = inlined_call_operand.vmem [shape: s32[2,1], index: 1, kind: input, shape index: {}]
  %s2 = inlined_call_operand.hbm [shape: f32[2,32,32], index: 2, kind: input, shape index: {}]
  %s3 = inlined_call_operand.hbm [shape: f32[1,8,128], index: 3, kind: output, shape index: {}]
  %s4 = sld [smem:[#allocation0]]
  $region26: #{tpu_custom_call.1} parent=0
    _
  %s6 = ssub.s32 1, %s4
  %s7 = scalar_select 0, %s6, %s4
  $region1: #{tpu_custom_call.1} parent=0
    #allocation2 [shape = 'u8[32768]{0}', space=vmem, size = 0x8000, scoped, tag = 'input window, operand 2, single buffered']
    #allocation3 [shape = 's32[1]{0}', space=sflag, size = 0x4, scoped, tag = 'scoped memory for tpu_custom_call.1']
    #allocation4 [shape = 's32[1]{0}', space=sflag, size = 0x4, scoped, tag = 'scoped memory for tpu_custom_call.1']
    #allocation5 [shape = 'u8[4096]{0}', space=vmem, size = 0x1000, scoped, tag = 'output window, operand 0, single buffered']
    %8 = vsyncpa [#allocation3], 0
    %9 = vsyncpa [#allocation4], 0
    // Predicated region
    $region2: #{tpu_custom_call.1} parent=1 // pred_check
      _
    $region3: #{tpu_custom_call.1} parent=1 // pred_check_branch
      %11 = sbr.rel (0) target = $region5
    $region4: #{tpu_custom_call.1} parent=1 // pred_region
      _
    $region5: #{tpu_custom_call.1} parent=1 // pred_fallthru
      _
    // Predicated region
    $region6: #{tpu_custom_call.1} parent=1 // pred_check
      _
    $region7: #{tpu_custom_call.1} parent=1 // pred_check_branch
      %13 = sbr.rel (0) target = $region9
    $region8: #{tpu_custom_call.1} parent=1 // pred_region
      _
    $region9: #{tpu_custom_call.1} parent=1 // pred_fallthru
      _
    // Predicated region
    $region10: #{tpu_custom_call.1} parent=1 // pred_check
      _
    $region11: #{tpu_custom_call.1} parent=1 // pred_check_branch
      %15 = sbr.rel (0) target = $region13
    $region12: #{tpu_custom_call.1} parent=1 // pred_region
      %s17 = ssub.s32 1024, 1024
      %18 = vsyncadd [#allocation3], %s17
      %s19 = sshll.u32 [#allocation2], 4
      %s20 = int_to_ptr.vmem [resolvable:$true] %s19
      %25 = dma.hbm_to_vmem [thread:$0]  %s2, 1024, %s20, [#allocation3], 128, 128, 8
    $region13: #{tpu_custom_call.1} parent=1 // pred_fallthru
      _
    // Predicated region
    $region14: #{tpu_custom_call.1} parent=1 // pred_check
      _
    $region15: #{tpu_custom_call.1} parent=1 // pred_check_branch
      %27 = sbr.rel (0) target = $region17
    $region16: #{tpu_custom_call.1} parent=1 // pred_region
      %28 = dma.done [#allocation3], 1024
    $region17: #{tpu_custom_call.1} parent=1 // pred_fallthru
      _
    %v29 = vld [vmem:[%s0] sm:$0x3]
    %v30 = vld [vmem:[%s1] sm:$0x3]
    %v31 = vlaneseq
    %v32 = vand.u32 %v31, 127
    %33 = vset.pattern.permute.xlu0 0
    %34 = vperm.xlu0 %33, %v30
    %v35 = vpop.permute.xlu0 %34
    %vm36 = vcmp.eq.s32.totalorder %v32, %v35
    %v37 = vsel %vm36, %v29, 0.0
    %vm38 = vcmask 123904
    %v39 = vsel %vm38, %v37, 0.0
    %40 = vadd.xlane.f32.xlu0 %v39
    %v41 = vpop.xlane.xlu0 %40
    %v42 = vrot.slane %v41, 4
    %v43 = vadd.f32 %v41, %v42
    %v44 = vrot.slane %v43, 2
    %v45 = vadd.f32 %v43, %v44
    %v46 = vrot.slane %v45, 1
    %v47 = vadd.f32 %v45, %v46
    %s48 = vtos %v47
    %s49 = ssub.f32 0.0, %s48
    %v50 = vld [vmem:[#allocation2] sm:$0xff]
    %v51 = vld [vmem:[#allocation2 + $0x8] sm:$0xff]
    %v52 = vld [vmem:[#allocation2 + $0x10] sm:$0xff]
    %v53 = vld [vmem:[#allocation2 + $0x18] sm:$0xff]
    %v54 = vld [vmem:[#allocation2 + $0x20] sm:$0xff]
    %v55 = vld [vmem:[#allocation2 + $0x28] sm:$0xff]
    %v56 = vld [vmem:[#allocation2 + $0x30] sm:$0xff]
    %v57 = vld [vmem:[#allocation2 + $0x38] sm:$0xff]
    %vm58 = vcmask 261120
    %v60 = vsel %vm58, %v50, 0
    %v63 = vsel %vm58, %v51, 0
    %v66 = vsel %vm58, %v52, 0
    %v69 = vsel %vm58, %v53, 0
    %71 = vmatprep.subr.mxu0 0.0
    %72 = vmatpush1.xpose.msra.mxu0 %v60
    %73 = vmatprep.subr.mxu0 0.0
    %74 = vmatpush1.xpose.msra.mxu0 %v63
    %75 = vmatprep.subr.mxu0 0.0
    %76 = vmatpush1.xpose.msra.mxu0 %v66
    %77 = vmatprep.subr.mxu0 0.0
    %78 = vmatpush1.xpose.msra.mxu0 %v69
    %79 = vmatprep.subr.mxu0 0.0
    %80 = vmatpush1.xpose.msra.mxu0 0.0
    %81 = vmatprep.subr.mxu0 0.0
    %82 = vmatpush1.xpose.msra.mxu0 0.0
    %83 = vmatprep.subr.mxu0 0.0
    %84 = vmatpush1.xpose.msra.mxu0 0.0
    %85 = vmatprep.subr.mxu0 0.0
    %86 = vmatpush1.xpose.msra.mxu0 0.0
    %87 = vmatprep.subr.mxu0 0.0
    %88 = vmatpush1.xpose.msra.mxu0 0.0
    %89 = vmatprep.subr.mxu0 0.0
    %90 = vmatpush1.xpose.msra.mxu0 0.0
    %91 = vmatprep.subr.mxu0 0.0
    %92 = vmatpush1.xpose.msra.mxu0 0.0
    %93 = vmatprep.subr.mxu0 0.0
    %94 = vmatpush1.xpose.msra.mxu0 0.0
    %95 = vmatprep.subr.mxu0 0.0
    %96 = vmatpush1.xpose.msra.mxu0 0.0
    %97 = vmatprep.subr.mxu0 0.0
    %98 = vmatpush1.xpose.msra.mxu0 0.0
    %99 = vmatprep.subr.mxu0 0.0
    %100 = vmatpush1.xpose.msra.mxu0 0.0
    %101 = vmatprep.subr.mxu0 0.0
    %102 = vmatpush1.xpose.msra.mxu0 0.0
    %103 = vmatprep.subr.mxu0 0.0
    %104 = vmatpush1.xpose.msra.mxu0 0.0
    %105 = vmatprep.subr.mxu0 0.0
    %106 = vmatpush1.xpose.msra.mxu0 0.0
    %107 = vmatprep.subr.mxu0 0.0
    %108 = vmatpush1.xpose.msra.mxu0 0.0
    %109 = vmatprep.subr.mxu0 0.0
    %110 = vmatpush1.xpose.msra.mxu0 0.0
    %111 = vmatprep.subr.mxu0 0.0
    %112 = vmatpush1.xpose.msra.mxu0 0.0
    %113 = vmatprep.subr.mxu0 0.0
    %114 = vmatpush1.xpose.msra.mxu0 0.0
    %115 = vmatprep.subr.mxu0 0.0
    %116 = vmatpush1.xpose.msra.mxu0 0.0
    %117 = vmatprep.subr.mxu0 0.0
    %118 = vmatpush1.xpose.msra.mxu0 0.0
    %119 = vmatprep.subr.mxu0 0.0
    %120 = vmatpush1.xpose.msra.mxu0 0.0
    %121 = vmatprep.subr.mxu0 0.0
    %122 = vmatpush1.xpose.msra.mxu0 0.0
    %123 = vmatprep.subr.mxu0 0.0
    %124 = vmatpush1.xpose.msra.mxu0 0.0
    %125 = vmatprep.subr.mxu0 0.0
    %126 = vmatpush1.xpose.msra.mxu0 0.0
    %127 = vmatprep.subr.mxu0 0.0
    %128 = vmatpush1.xpose.msra.mxu0 0.0
    %129 = vmatprep.subr.mxu0 0.0
    %130 = vmatpush1.xpose.msra.mxu0 0.0
    %131 = vmatprep.subr.mxu0 0.0
    %132 = vmatpush1.xpose.msra.mxu0 0.0
    %133 = vmatprep.subr.mxu0 0.0
    %134 = vmatpush1.xpose.msra.mxu0 0.0
    %135 = vmatprep.mubr.f32.mxu0 0.0
    %136 = vmatmul.mubr.f32.gmra.mrb[0].mxu0 %v60
    %v137 = vpop.f32.mrb[0].mxu0
    %v138 = vadd.f32 0.0, %v137
    %v139 = vpop.f32.mrb[0].mxu0
    %140 = vmatprep.mubr.f32.mxu0 0.0
    %141 = vmatmul.mubr.f32.gmra.mrb[0].mxu0 %v63
    %v142 = vpop.f32.mrb[0].mxu0
    %v143 = vadd.f32 0.0, %v142
    %v144 = vpop.f32.mrb[0].mxu0
    %145 = vmatprep.mubr.f32.mxu0 0.0
    %146 = vmatmul.mubr.f32.gmra.mrb[0].mxu0 %v66
    %v147 = vpop.f32.mrb[0].mxu0
    %v148 = vadd.f32 0.0, %v147
    %v149 = vpop.f32.mrb[0].mxu0
    %150 = vmatprep.mubr.f32.mxu0 0.0
    %151 = vmatmul.mubr.f32.gmra.mrb[0].mxu0 %v69
    %v152 = vpop.f32.mrb[0].mxu0
    %v153 = vadd.f32 0.0, %v152
    %v154 = vpop.f32.mrb[0].mxu0
    %155 = vdwg.mxu0
    %v157 = vsel %vm58, %v54, 0
    %v160 = vsel %vm58, %v55, 0
    %v163 = vsel %vm58, %v56, 0
    %v166 = vsel %vm58, %v57, 0
    %168 = vmatprep.subr.mxu0 0.0
    %169 = vmatpush1.xpose.msra.mxu0 %v157
    %170 = vmatprep.subr.mxu0 0.0
    %171 = vmatpush1.xpose.msra.mxu0 %v160
    %172 = vmatprep.subr.mxu0 0.0
    %173 = vmatpush1.xpose.msra.mxu0 %v163
    %174 = vmatprep.subr.mxu0 0.0
    %175 = vmatpush1.xpose.msra.mxu0 %v166
    %176 = vmatprep.subr.mxu0 0.0
    %177 = vmatpush1.xpose.msra.mxu0 0.0
    %178 = vmatprep.subr.mxu0 0.0
    %179 = vmatpush1.xpose.msra.mxu0 0.0
    %180 = vmatprep.subr.mxu0 0.0
    %181 = vmatpush1.xpose.msra.mxu0 0.0
    %182 = vmatprep.subr.mxu0 0.0
    %183 = vmatpush1.xpose.msra.mxu0 0.0
    %184 = vmatprep.subr.mxu0 0.0
    %185 = vmatpush1.xpose.msra.mxu0 0.0
    %186 = vmatprep.subr.mxu0 0.0
    %187 = vmatpush1.xpose.msra.mxu0 0.0
    %188 = vmatprep.subr.mxu0 0.0
    %189 = vmatpush1.xpose.msra.mxu0 0.0
    %190 = vmatprep.subr.mxu0 0.0
    %191 = vmatpush1.xpose.msra.mxu0 0.0
    %192 = vmatprep.subr.mxu0 0.0
    %193 = vmatpush1.xpose.msra.mxu0 0.0
    %194 = vmatprep.subr.mxu0 0.0
    %195 = vmatpush1.xpose.msra.mxu0 0.0
    %196 = vmatprep.subr.mxu0 0.0
    %197 = vmatpush1.xpose.msra.mxu0 0.0
    %198 = vmatprep.subr.mxu0 0.0
    %199 = vmatpush1.xpose.msra.mxu0 0.0
    %200 = vmatprep.subr.mxu0 0.0
    %201 = vmatpush1.xpose.msra.mxu0 0.0
    %202 = vmatprep.subr.mxu0 0.0
    %203 = vmatpush1.xpose.msra.mxu0 0.0
    %204 = vmatprep.subr.mxu0 0.0
    %205 = vmatpush1.xpose.msra.mxu0 0.0
    %206 = vmatprep.subr.mxu0 0.0
    %207 = vmatpush1.xpose.msra.mxu0 0.0
    %208 = vmatprep.subr.mxu0 0.0
    %209 = vmatpush1.xpose.msra.mxu0 0.0
    %210 = vmatprep.subr.mxu0 0.0
    %211 = vmatpush1.xpose.msra.mxu0 0.0
    %212 = vmatprep.subr.mxu0 0.0
    %213 = vmatpush1.xpose.msra.mxu0 0.0
    %214 = vmatprep.subr.mxu0 0.0
    %215 = vmatpush1.xpose.msra.mxu0 0.0
    %216 = vmatprep.subr.mxu0 0.0
    %217 = vmatpush1.xpose.msra.mxu0 0.0
    %218 = vmatprep.subr.mxu0 0.0
    %219 = vmatpush1.xpose.msra.mxu0 0.0
    %220 = vmatprep.subr.mxu0 0.0
    %221 = vmatpush1.xpose.msra.mxu0 0.0
    %222 = vmatprep.subr.mxu0 0.0
    %223 = vmatpush1.xpose.msra.mxu0 0.0
    %224 = vmatprep.subr.mxu0 0.0
    %225 = vmatpush1.xpose.msra.mxu0 0.0
    %226 = vmatprep.subr.mxu0 0.0
    %227 = vmatpush1.xpose.msra.mxu0 0.0
    %228 = vmatprep.subr.mxu0 0.0
    %229 = vmatpush1.xpose.msra.mxu0 0.0
    %230 = vmatprep.subr.mxu0 0.0
    %231 = vmatpush1.xpose.msra.mxu0 0.0
    %232 = vmatprep.mubr.f32.mxu0 0.0
    %233 = vmatmul.mubr.f32.gmra.mrb[0].mxu0 %v157
    %v234 = vpop.f32.mrb[0].mxu0
    %v235 = vadd.f32 0.0, %v234
    %v236 = vpop.f32.mrb[0].mxu0
    %237 = vmatprep.mubr.f32.mxu0 0.0
    %238 = vmatmul.mubr.f32.gmra.mrb[0].mxu0 %v160
    %v239 = vpop.f32.mrb[0].mxu0
    %v240 = vadd.f32 0.0, %v239
    %v241 = vpop.f32.mrb[0].mxu0
    %242 = vmatprep.mubr.f32.mxu0 0.0
    %243 = vmatmul.mubr.f32.gmra.mrb[0].mxu0 %v163
    %v244 = vpop.f32.mrb[0].mxu0
    %v245 = vadd.f32 0.0, %v244
    %v246 = vpop.f32.mrb[0].mxu0
    %247 = vmatprep.mubr.f32.mxu0 0.0
    %248 = vmatmul.mubr.f32.gmra.mrb[0].mxu0 %v166
    %v249 = vpop.f32.mrb[0].mxu0
    %v250 = vadd.f32 0.0, %v249
    %v251 = vpop.f32.mrb[0].mxu0
    %252 = vdwg.mxu0
    %v253 = vlaneseq
    %v254 = vshrl.u32 %v253, 7
    %v255 = vadd.s32 %v254, 8
    %v256 = vadd.s32 %v254, 16
    %v257 = vadd.s32 %v254, 24
    %vm258 = vcmp.eq.s32.totalorder %v254, %v32
    %vm259 = vcmp.eq.s32.totalorder %v255, %v32
    %vm260 = vcmp.eq.s32.totalorder %v256, %v32
    %vm261 = vcmp.eq.s32.totalorder %v257, %v32
    %v262 = vsel %vm258, 1, 0
    %v263 = vsel %vm259, 1, 0
    %v264 = vsel %vm260, 1, 0
    %v265 = vsel %vm261, 1, 0
    %v266 = vcvt.s32.f32 %v262
    %v267 = vcvt.s32.f32 %v263
    %v268 = vcvt.s32.f32 %v264
    %v269 = vcvt.s32.f32 %v265
    %v270 = vmul.f32 %v138, %v138
    %v271 = vmul.f32 %v143, %v143
    %v272 = vmul.f32 %v148, %v148
    %v273 = vmul.f32 %v153, %v153
    %v274 = vmul.f32 %v235, %v235
    %v275 = vmul.f32 %v240, %v240
    %v276 = vmul.f32 %v245, %v245
    %v277 = vmul.f32 %v250, %v250
    %v278 = vsel %vm58, %v270, 0.0
    %279 = vadd.xlane.f32.xlu0 %v278
    %v280 = vpop.xlane.xlu0 %279
    %v281 = vsel %vm58, %v271, 0.0
    %282 = vadd.xlane.f32.xlu0 %v281
    %v283 = vpop.xlane.xlu0 %282
    %v284 = vsel %vm58, %v272, 0.0
    %285 = vadd.xlane.f32.xlu0 %v284
    %v286 = vpop.xlane.xlu0 %285
    %v287 = vsel %vm58, %v273, 0.0
    %288 = vadd.xlane.f32.xlu0 %v287
    %v289 = vpop.xlane.xlu0 %288
    %v290 = vsel %vm58, %v274, 0.0
    %291 = vadd.xlane.f32.xlu0 %v290
    %v292 = vpop.xlane.xlu0 %291
    %v293 = vsel %vm58, %v275, 0.0
    %294 = vadd.xlane.f32.xlu0 %v293
    %v295 = vpop.xlane.xlu0 %294
    %v296 = vsel %vm58, %v276, 0.0
    %297 = vadd.xlane.f32.xlu0 %v296
    %v298 = vpop.xlane.xlu0 %297
    %v299 = vsel %vm58, %v277, 0.0
    %300 = vadd.xlane.f32.xlu0 %v299
    %v301 = vpop.xlane.xlu0 %300
    %v310 = vlaneseq
    %v311 = vshrl.u32 %v310, 7
    %v312 = vsub.s32 %v32, %v311
    %v313 = vrot.slane %v280, %v312
    %v314 = vadd.s32 %v32, 4294967288
    %v315 = vlaneseq
    %v316 = vshrl.u32 %v315, 7
    %v317 = vsub.s32 %v314, %v316
    %v318 = vrot.slane %v283, %v317
    %vm319 = vcmask 130112
    %v320 = vsel %vm319, %v318, %v313
    %v321 = vadd.s32 %v32, 4294967280
    %v322 = vlaneseq
    %v323 = vshrl.u32 %v322, 7
    %v324 = vsub.s32 %v321, %v323
    %v325 = vrot.slane %v286, %v324
    %vm326 = vcmask 195712
    %v327 = vsel %vm326, %v325, %v320
    %v328 = vadd.s32 %v32, 4294967272
    %v329 = vlaneseq
    %v330 = vshrl.u32 %v329, 7
    %v331 = vsub.s32 %v328, %v330
    %v332 = vrot.slane %v289, %v331
    %vm333 = vcmask 261312
    %v334 = vsel %vm333, %v332, %v327
    %v335 = vlaneseq
    %v336 = vshrl.u32 %v335, 7
    %v337 = vsub.s32 %v32, %v336
    %v338 = vrot.slane %v292, %v337
    %v339 = vlaneseq
    %v340 = vshrl.u32 %v339, 7
    %v341 = vsub.s32 %v314, %v340
    %v342 = vrot.slane %v295, %v341
    %v343 = vsel %vm319, %v342, %v338
    %v344 = vlaneseq
    %v345 = vshrl.u32 %v344, 7
    %v346 = vsub.s32 %v321, %v345
    %v347 = vrot.slane %v298, %v346
    %v348 = vsel %vm326, %v347, %v343
    %v349 = vlaneseq
    %v350 = vshrl.u32 %v349, 7
    %v351 = vsub.s32 %v328, %v350
    %v352 = vrot.slane %v301, %v351
    %v353 = vsel %vm333, %v352, %v348
    %vm354 = vcmask 1041409
    %v355 = vsel %vm354, %v353, %v334
    %vm357 = vcmask 254976
    %v358 = vsel %vm357, %v355, 0.0
    %359 = vadd.xlane.f32.xlu0 %v358
    %v360 = vpop.xlane.xlu0 %359
    %v361 = vmul.f32 %v138, %v266
    %v362 = vmul.f32 %v143, %v267
    %v363 = vmul.f32 %v148, %v268
    %v364 = vmul.f32 %v153, %v269
    %v365 = vmul.f32 %v235, %v266
    %v366 = vmul.f32 %v240, %v267
    %v367 = vmul.f32 %v245, %v268
    %v368 = vmul.f32 %v250, %v269
    %v369 = vsel %vm58, %v361, 0.0
    %370 = vadd.xlane.f32.xlu0 %v369
    %v371 = vpop.xlane.xlu0 %370
    %v372 = vsel %vm58, %v362, 0.0
    %373 = vadd.xlane.f32.xlu0 %v372
    %v374 = vpop.xlane.xlu0 %373
    %v375 = vsel %vm58, %v363, 0.0
    %376 = vadd.xlane.f32.xlu0 %v375
    %v377 = vpop.xlane.xlu0 %376
    %v378 = vsel %vm58, %v364, 0.0
    %379 = vadd.xlane.f32.xlu0 %v378
    %v380 = vpop.xlane.xlu0 %379
    %v381 = vsel %vm58, %v365, 0.0
    %382 = vadd.xlane.f32.xlu0 %v381
    %v383 = vpop.xlane.xlu0 %382
    %v384 = vsel %vm58, %v366, 0.0
    %385 = vadd.xlane.f32.xlu0 %v384
    %v386 = vpop.xlane.xlu0 %385
    %v387 = vsel %vm58, %v367, 0.0
    %388 = vadd.xlane.f32.xlu0 %v387
    %v389 = vpop.xlane.xlu0 %388
    %v390 = vsel %vm58, %v368, 0.0
    %391 = vadd.xlane.f32.xlu0 %v390
    %v392 = vpop.xlane.xlu0 %391
    %v401 = vlaneseq
    %v402 = vshrl.u32 %v401, 7
    %v403 = vsub.s32 %v32, %v402
    %v404 = vrot.slane %v371, %v403
    %v405 = vlaneseq
    %v406 = vshrl.u32 %v405, 7
    %v407 = vsub.s32 %v314, %v406
    %v408 = vrot.slane %v374, %v407
    %v409 = vsel %vm319, %v408, %v404
    %v410 = vlaneseq
    %v411 = vshrl.u32 %v410, 7
    %v412 = vsub.s32 %v321, %v411
    %v413 = vrot.slane %v377, %v412
    %v414 = vsel %vm326, %v413, %v409
    %v415 = vlaneseq
    %v416 = vshrl.u32 %v415, 7
    %v417 = vsub.s32 %v328, %v416
    %v418 = vrot.slane %v380, %v417
    %v419 = vsel %vm333, %v418, %v414
    %v420 = vlaneseq
    %v421 = vshrl.u32 %v420, 7
    %v422 = vsub.s32 %v32, %v421
    %v423 = vrot.slane %v383, %v422
    %v424 = vlaneseq
    %v425 = vshrl.u32 %v424, 7
    %v426 = vsub.s32 %v314, %v425
    %v427 = vrot.slane %v386, %v426
    %v428 = vsel %vm319, %v427, %v423
    %v429 = vlaneseq
    %v430 = vshrl.u32 %v429, 7
    %v431 = vsub.s32 %v321, %v430
    %v432 = vrot.slane %v389, %v431
    %v433 = vsel %vm326, %v432, %v428
    %v434 = vlaneseq
    %v435 = vshrl.u32 %v434, 7
    %v436 = vsub.s32 %v328, %v435
    %v437 = vrot.slane %v392, %v436
    %v438 = vsel %vm333, %v437, %v433
    %v439 = vsel %vm354, %v438, %v419
    %v441 = vsel %vm357, %v439, 0.0
    %442 = vadd.xlane.f32.xlu0 %v441
    %v443 = vpop.xlane.xlu0 %442
    %v444 = vmul.f32 %v443, 2.0
    %v445 = vsub.f32 %v360, %v444
    %v446 = vadd.f32 %v445, 32.0
    %v447 = vmax.f32 %v446, 0.0
    %v448 = vrsqrt.pop %v447
    %v449 = vmul.f32 %v447, %v448
    %vm450 = vcmp.eq.f32.partialorder %v447, inf
    %v451 = vsel %vm450, %v447, %v449
    %vm452 = vcmp.eq.f32.partialorder %v447, 0.0
    %v453 = vand.u32 %v447, 2147483648
    %v454 = vsel %vm452, %v453, %v451
    %s455 = smul.u32 0, 2
    %v456 = vstv %s455
    %v457 = vadd.s32 %v456, %v254
    %vm458 = vcmp.lt.s32.totalorder %v457, 2
    %v459 = vsel %vm458, 1, 0
    %v460 = vcvt.s32.f32 %v459
    %v461 = vmul.f32 %v454, %v460
    %vm462 = vcmask 1024
    %v463 = vsel %vm462, %v461, 0.0
    %464 = vadd.xlane.f32.xlu0 %v463
    %v465 = vpop.xlane.xlu0 %464
    %v466 = vrot.slane %v465, 4
    %v467 = vadd.f32 %v465, %v466
    %v468 = vrot.slane %v467, 2
    %v469 = vadd.f32 %v467, %v468
    %v470 = vrot.slane %v469, 1
    %v471 = vadd.f32 %v469, %v470
    %s472 = vtos %v471
    %s473 = smul.f32 %s49, 0.5
    %s474 = smul.f32 %s472, 0.0005
    %s475 = sadd.f32 %s473, %s474
    %v476 = vstv %s475
    %477 = vst [vmem:[#allocation5] sm:$0xff] %v476
    // Predicated region
    $region18: #{tpu_custom_call.1} parent=1 // pred_check
      _
    $region19: #{tpu_custom_call.1} parent=1 // pred_check_branch
      %479 = sbr.rel (0) target = $region21
    $region20: #{tpu_custom_call.1} parent=1 // pred_region
      %s481 = ssub.s32 128, 128
      %482 = vsyncadd [#allocation4], %s481
      %s484 = sshll.u32 [#allocation5], 4
      %s485 = int_to_ptr.vmem [resolvable:$true] %s484
      %487 = dma.vmem_to_hbm [thread:$0]  %s485, 128, %s3, [#allocation4]
    $region21: #{tpu_custom_call.1} parent=1 // pred_fallthru
      _
    // Predicated region
    $region22: #{tpu_custom_call.1} parent=1 // pred_check
      _
    $region23: #{tpu_custom_call.1} parent=1 // pred_check_branch
      %489 = sbr.rel (0) target = $region25
    $region24: #{tpu_custom_call.1} parent=1 // pred_region
      %490 = dma.done [#allocation4], 128
    $region25: #{tpu_custom_call.1} parent=1 // pred_fallthru
      _
    %491 = vsyncpa [#allocation3], 1
    %492 = vsyncpa [#allocation4], 1

</llo_original>
